<compile_context>
chip_gen: v7x
topology: tpu7x:2x2x1
jax: 0.10.0
libtpu: 0.0.40
codegen_flags: <defaults>
</compile_context>

<pallas_src>
import math
import functools

import jax
import jax.numpy as jnp
from jax import lax
from jax.experimental import pallas as pl
from jax.experimental.pallas import tpu as pltpu


def _self_attn_kernel(x_ref, w_ref, b_ref, mask_ref, ctx_ref, scores_ref, *,
                      num_heads, head_size):
    """Per-batch-element fused kernel.

    x_ref:      (1, S, H)   bf16 activations
    w_ref:      (H, 3H)     bf16 fused [Wq | Wk | Wv]  (resident across grid)
    b_ref:      (1, 3H)     f32 fused bias
    mask_ref:   (1, 1, S)   f32 additive key mask
    ctx_ref:    (1, S, H)   f32 context output (lane-dense, final layout)
    scores_ref: (1, nh, S, S) f32 pre-softmax scaled+masked scores
    """
    H = num_heads * head_size
    d = head_size

    x = x_ref[0]              # (S, H) bf16
    w = w_ref[...]            # (H, 3H) bf16
    b = b_ref[...]            # (1, 3H) f32
    mask = mask_ref[0]        # (1, S) f32

    # Single fused QKV projection on the MXU (f32 accumulation).
    qkv = jnp.dot(x, w, preferred_element_type=jnp.float32) + b   # (S, 3H) f32

    scale = 1.0 / math.sqrt(d)

    # Per-head attention; dominant FLOPs already spent in the fused projection.
    for h in range(num_heads):
        q = (qkv[:, h * d:(h + 1) * d] * scale).astype(jnp.bfloat16)        # (S, d)
        k = qkv[:, H + h * d:H + (h + 1) * d].astype(jnp.bfloat16)          # (S, d)
        v = qkv[:, 2 * H + h * d:2 * H + (h + 1) * d].astype(jnp.bfloat16)  # (S, d)

        # q @ k^T via dot_general contracting the last dims (no explicit .T).
        s = lax.dot_general(q, k, (((1,), (1,)), ((), ())),
                            preferred_element_type=jnp.float32)              # (S, S)
        s = s + mask  # broadcast (1, S) over query rows

        # Softmax along keys (f32 on VPU; reciprocal on EUP).
        m = jnp.max(s, axis=-1, keepdims=True)
        e = jnp.exp(s - m)
        denom = jnp.sum(e, axis=-1, keepdims=True)
        p = e * pl.reciprocal(denom, approx=True)

        ctx = jnp.dot(p.astype(jnp.bfloat16), v,
                      preferred_element_type=jnp.float32)                    # (S, d)

        scores_ref[0, h] = s
        ctx_ref[0, :, h * d:(h + 1) * d] = ctx.astype(ctx_ref.dtype)


def bert_self_attention(hidden_states, attention_mask, params,
                        num_heads, head_size):
    """hidden_states: [B, S, H] f32; attention_mask: [B, S] additive f32.

    params: dict with wq/wk/wv of shape [H, H] (in->out, i.e. torch W.T) and
    bq/bk/bv of shape [H].
    Returns (context_layer [B, S, H] f32, attention_scores [B, nh, S, S] f32).
    """
    B, S, H = hidden_states.shape
    nh, d = num_heads, head_size
    assert nh * d == H

    # Fuse QKV weights/biases so one MXU pass produces Q|K|V (N = 3H wide).
    w_qkv = jnp.concatenate(
        [params["wq"], params["wk"], params["wv"]], axis=1).astype(jnp.bfloat16)  # (H, 3H)
    b_qkv = jnp.concatenate(
        [params["bq"], params["bk"], params["bv"]]).reshape(1, 3 * H).astype(jnp.float32)

    x_bf16 = hidden_states.astype(jnp.bfloat16)
    mask3 = attention_mask.reshape(B, 1, S).astype(jnp.float32)

    grid = (B,)
    x_spec = pl.BlockSpec((1, S, H), lambda b: (b, 0, 0))
    w_spec = pl.BlockSpec((H, 3 * H), lambda b: (0, 0))       # constant -> resident
    b_spec = pl.BlockSpec((1, 3 * H), lambda b: (0, 0))       # constant -> resident
    m_spec = pl.BlockSpec((1, 1, S), lambda b: (b, 0, 0))
    ctx_spec = pl.BlockSpec((1, S, H), lambda b: (b, 0, 0))   # final [B,S,H] layout
    sc_spec = pl.BlockSpec((1, nh, S, S), lambda b: (b, 0, 0, 0))

    kernel = functools.partial(_self_attn_kernel, num_heads=nh, head_size=d)

    context, scores = pl.pallas_call(
        kernel,
        out_shape=(jax.ShapeDtypeStruct((B, S, H), jnp.float32),
                   jax.ShapeDtypeStruct((B, nh, S, S), jnp.float32)),
        grid_spec=pltpu.PrefetchScalarGridSpec(
            num_scalar_prefetch=0,
            grid=grid,
            in_specs=[x_spec, w_spec, b_spec, m_spec],
            out_specs=(ctx_spec, sc_spec),
        ),
        compiler_params=pltpu.CompilerParams(
            dimension_semantics=("parallel",)),
    )(x_bf16, w_qkv, b_qkv, mask3)

    return context, scores


def _reference(hidden_states, attention_mask, params, num_heads, head_size):
    """Pure-JAX reference with the same bf16-MXU-input / f32-accumulate policy."""
    B, S, H = hidden_states.shape
    nh, d = num_heads, head_size
    x = hidden_states.astype(jnp.bfloat16)

    def proj(wname, bname):
        w = params[wname].astype(jnp.bfloat16)
        return jnp.dot(x, w, preferred_element_type=jnp.float32) + params[bname]

    q = proj("wq", "bq")
    k = proj("wk", "bk")
    v = proj("wv", "bv")

    def t4s(t):  # [B,S,H] -> [B,nh,S,d]
        return t.reshape(B, S, nh, d).transpose(0, 2, 1, 3)

    q, k, v = t4s(q), t4s(k), t4s(v)
    scale = 1.0 / math.sqrt(d)
    qb = (q * scale).astype(jnp.bfloat16)
    kb = k.astype(jnp.bfloat16)
    scores = jnp.einsum("bhqd,bhkd->bhqk", qb, kb,
                        preferred_element_type=jnp.float32)
    scores = scores + attention_mask[:, None, None, :]
    probs = jax.nn.softmax(scores, axis=-1)
    ctx = jnp.einsum("bhqk,bhkd->bhqd", probs.astype(jnp.bfloat16),
                     v.astype(jnp.bfloat16), preferred_element_type=jnp.float32)
    ctx = ctx.transpose(0, 2, 1, 3).reshape(B, S, H)
    return ctx, scores


if __name__ == "__main__":
    # Small BERT-like config
    B, S, H = 2, 8, 32
    num_heads, head_size = 4, 8

    key = jax.random.PRNGKey(0)
    k_x, k_m, k_wq, k_wk, k_wv, k_bq, k_bk, k_bv = jax.random.split(key, 8)

    hidden_states = jax.random.normal(k_x, (B, S, H), dtype=jnp.float32)
    # Additive attention mask: 0 for attended positions, -10000 for masked.
    mask_bits = (jax.random.uniform(k_m, (B, S)) > 0.2).astype(jnp.float32)
    attention_mask = (1.0 - mask_bits) * -10000.0

    scale = 1.0 / math.sqrt(H)
    params = {
        "wq": jax.random.normal(k_wq, (H, H), dtype=jnp.float32) * scale,
        "wk": jax.random.normal(k_wk, (H, H), dtype=jnp.float32) * scale,
        "wv": jax.random.normal(k_wv, (H, H), dtype=jnp.float32) * scale,
        "bq": jax.random.normal(k_bq, (H,), dtype=jnp.float32) * 0.1,
        "bk": jax.random.normal(k_bk, (H,), dtype=jnp.float32) * 0.1,
        "bv": jax.random.normal(k_bv, (H,), dtype=jnp.float32) * 0.1,
    }

    ctx, scores = bert_self_attention(hidden_states, attention_mask, params,
                                      num_heads, head_size)
    jax.block_until_ready((ctx, scores))

    ctx_ref, scores_ref = _reference(hidden_states, attention_mask, params,
                                     num_heads, head_size)
    assert jnp.allclose(ctx, ctx_ref, atol=2e-2, rtol=2e-2), \
        float(jnp.max(jnp.abs(ctx - ctx_ref)))
    assert jnp.allclose(scores, scores_ref, atol=1e-2, rtol=1e-2), \
        float(jnp.max(jnp.abs(scores - scores_ref)))

    print("KERNEL_OK")
</pallas_src>

<mosaic_0001>
module attributes {stable_mosaic.version = 11 : i64} {
  func.func @_self_attn_kernel(%arg0: i32, %arg1: memref<1x8x32xbf16, #tpu.memory_space<vmem>>, %arg2: memref<32x96xbf16, #tpu.memory_space<vmem>>, %arg3: memref<1x96xf32, #tpu.memory_space<vmem>>, %arg4: memref<1x1x8xf32, #tpu.memory_space<vmem>>, %arg5: memref<1x8x32xf32, #tpu.memory_space<vmem>>, %arg6: memref<1x4x8x8xf32, #tpu.memory_space<vmem>>) attributes {dimension_semantics = [#tpu.dimension_semantics<parallel>], iteration_bounds = array<i64: 2>, scalar_prefetch = 0 : i64, scratch_operands = 0 : i64, tpu.core_type = #tpu.core_type<tc>, window_params = [{transform_indices = @transform_0, window_bounds = array<i64: 1, 8, 32>}, {pipeline_mode = #tpu.pipeline_mode<synchronous>, transform_indices = @transform_1, window_bounds = array<i64: 32, 96>}, {pipeline_mode = #tpu.pipeline_mode<synchronous>, transform_indices = @transform_2, window_bounds = array<i64: 1, 96>}, {transform_indices = @transform_3, window_bounds = array<i64: 1, 1, 8>}, {transform_indices = @transform_4, window_bounds = array<i64: 1, 8, 32>}, {transform_indices = @transform_5, window_bounds = array<i64: 1, 4, 8, 8>}]} {
    %c0 = arith.constant 0 : index
    %c0_0 = arith.constant 0 : index
    %c0_1 = arith.constant 0 : index
    %0 = vector.load %arg1[%c0, %c0_0, %c0_1] : memref<1x8x32xbf16, #tpu.memory_space<vmem>>, vector<1x8x32xbf16>
    %1 = vector.shape_cast %0 : vector<1x8x32xbf16> to vector<8x32xbf16>
    %c0_2 = arith.constant 0 : index
    %c0_3 = arith.constant 0 : index
    %2 = vector.load %arg2[%c0_2, %c0_3] : memref<32x96xbf16, #tpu.memory_space<vmem>>, vector<32x96xbf16>
    %c0_4 = arith.constant 0 : index
    %c0_5 = arith.constant 0 : index
    %3 = vector.load %arg3[%c0_4, %c0_5] : memref<1x96xf32, #tpu.memory_space<vmem>>, vector<1x96xf32>
    %c0_6 = arith.constant 0 : index
    %c0_7 = arith.constant 0 : index
    %c0_8 = arith.constant 0 : index
    %4 = vector.load %arg4[%c0_6, %c0_7, %c0_8] : memref<1x1x8xf32, #tpu.memory_space<vmem>>, vector<1x1x8xf32>
    %5 = vector.shape_cast %4 : vector<1x1x8xf32> to vector<1x8xf32>
    %cst = arith.constant dense<0.000000e+00> : vector<8x96xf32>
    %6 = tpu.matmul %1, %2, %cst {dimension_numbers = #tpu.dot_dimension_numbers<[1], [0], [0], [1], [0, 0, 1, 1], [], []>} : vector<8x32xbf16>, vector<32x96xbf16>, vector<8x96xf32> -> vector<8x96xf32>
    %7 = vector.broadcast %3 : vector<1x96xf32> to vector<8x96xf32>
    %8 = arith.addf %6, %7 : vector<8x96xf32>
    %9 = vector.extract_strided_slice %8 {offsets = [0, 0], sizes = [8, 8], strides = [1, 1]} : vector<8x96xf32> to vector<8x8xf32>
    %cst_9 = arith.constant 0.353553385 : f32
    %10 = vector.broadcast %cst_9 : f32 to vector<8x8xf32>
    %11 = arith.mulf %9, %10 : vector<8x8xf32>
    %12 = arith.truncf %11 : vector<8x8xf32> to vector<8x8xbf16>
    %13 = vector.extract_strided_slice %8 {offsets = [0, 32], sizes = [8, 8], strides = [1, 1]} : vector<8x96xf32> to vector<8x8xf32>
    %14 = arith.truncf %13 : vector<8x8xf32> to vector<8x8xbf16>
    %15 = vector.extract_strided_slice %8 {offsets = [0, 64], sizes = [8, 8], strides = [1, 1]} : vector<8x96xf32> to vector<8x8xf32>
    %16 = arith.truncf %15 : vector<8x8xf32> to vector<8x8xbf16>
    %cst_10 = arith.constant dense<0.000000e+00> : vector<8x8xf32>
    %17 = tpu.matmul %12, %14, %cst_10 {dimension_numbers = #tpu.dot_dimension_numbers<[1], [1], [0], [0], [0, 0, 1, 0], [], []>} : vector<8x8xbf16>, vector<8x8xbf16>, vector<8x8xf32> -> vector<8x8xf32>
    %18 = vector.broadcast %5 : vector<1x8xf32> to vector<8x8xf32>
    %19 = arith.addf %17, %18 : vector<8x8xf32>
    %cst_11 = arith.constant dense<0xFF800000> : vector<8xf32>
    %20 = vector.multi_reduction <maximumf>, %19, %cst_11 [1] : vector<8x8xf32> to vector<8xf32>
    %21 = vector.shape_cast %20 : vector<8xf32> to vector<8x1xf32>
    %22 = vector.broadcast %21 : vector<8x1xf32> to vector<8x8xf32>
    %23 = arith.subf %19, %22 : vector<8x8xf32>
    %24 = math.exp %23 : vector<8x8xf32>
    %cst_12 = arith.constant dense<0.000000e+00> : vector<8xf32>
    %25 = vector.multi_reduction <add>, %24, %cst_12 [1] : vector<8x8xf32> to vector<8xf32>
    %26 = vector.shape_cast %25 : vector<8xf32> to vector<8x1xf32>
    %27 = tpu.reciprocal %26 {approx = true} : vector<8x1xf32> -> vector<8x1xf32>
    %28 = vector.broadcast %27 : vector<8x1xf32> to vector<8x8xf32>
    %29 = arith.mulf %24, %28 : vector<8x8xf32>
    %30 = arith.truncf %29 : vector<8x8xf32> to vector<8x8xbf16>
    %cst_13 = arith.constant dense<0.000000e+00> : vector<8x8xf32>
    %31 = tpu.matmul %30, %16, %cst_13 {dimension_numbers = #tpu.dot_dimension_numbers<[1], [0], [0], [1], [0, 0, 1, 1], [], []>} : vector<8x8xbf16>, vector<8x8xbf16>, vector<8x8xf32> -> vector<8x8xf32>
    %c0_14 = arith.constant 0 : index
    %c0_15 = arith.constant 0 : index
    %c0_16 = arith.constant 0 : index
    %c0_17 = arith.constant 0 : index
    %32 = vector.load %arg6[%c0_14, %c0_15, %c0_16, %c0_17] : memref<1x4x8x8xf32, #tpu.memory_space<vmem>>, vector<1x1x8x8xf32>
    %33 = vector.shape_cast %32 : vector<1x1x8x8xf32> to vector<8x8xf32>
    %34 = vector.shape_cast %19 : vector<8x8xf32> to vector<1x1x8x8xf32>
    tpu.vector_store %arg6[%c0_14, %c0_15, %c0_16, %c0_17], %34 {strides = array<i32>} : memref<1x4x8x8xf32, #tpu.memory_space<vmem>>, vector<1x1x8x8xf32>,
    %c0_18 = arith.constant 0 : index
    %c0_19 = arith.constant 0 : index
    %c0_20 = arith.constant 0 : index
    %35 = vector.load %arg5[%c0_18, %c0_19, %c0_20] : memref<1x8x32xf32, #tpu.memory_space<vmem>>, vector<1x8x8xf32>
    %36 = vector.shape_cast %35 : vector<1x8x8xf32> to vector<8x8xf32>
    %37 = vector.shape_cast %31 : vector<8x8xf32> to vector<1x8x8xf32>
    tpu.vector_store %arg5[%c0_18, %c0_19, %c0_20], %37 {strides = array<i32>} : memref<1x8x32xf32, #tpu.memory_space<vmem>>, vector<1x8x8xf32>,
    %38 = vector.extract_strided_slice %8 {offsets = [0, 8], sizes = [8, 8], strides = [1, 1]} : vector<8x96xf32> to vector<8x8xf32>
    %cst_21 = arith.constant 0.353553385 : f32
    %39 = vector.broadcast %cst_21 : f32 to vector<8x8xf32>
    %40 = arith.mulf %38, %39 : vector<8x8xf32>
    %41 = arith.truncf %40 : vector<8x8xf32> to vector<8x8xbf16>
    %42 = vector.extract_strided_slice %8 {offsets = [0, 40], sizes = [8, 8], strides = [1, 1]} : vector<8x96xf32> to vector<8x8xf32>
    %43 = arith.truncf %42 : vector<8x8xf32> to vector<8x8xbf16>
    %44 = vector.extract_strided_slice %8 {offsets = [0, 72], sizes = [8, 8], strides = [1, 1]} : vector<8x96xf32> to vector<8x8xf32>
    %45 = arith.truncf %44 : vector<8x8xf32> to vector<8x8xbf16>
    %cst_22 = arith.constant dense<0.000000e+00> : vector<8x8xf32>
    %46 = tpu.matmul %41, %43, %cst_22 {dimension_numbers = #tpu.dot_dimension_numbers<[1], [1], [0], [0], [0, 0, 1, 0], [], []>} : vector<8x8xbf16>, vector<8x8xbf16>, vector<8x8xf32> -> vector<8x8xf32>
    %47 = vector.broadcast %5 : vector<1x8xf32> to vector<8x8xf32>
    %48 = arith.addf %46, %47 : vector<8x8xf32>
    %cst_23 = arith.constant dense<0xFF800000> : vector<8xf32>
    %49 = vector.multi_reduction <maximumf>, %48, %cst_23 [1] : vector<8x8xf32> to vector<8xf32>
    %50 = vector.shape_cast %49 : vector<8xf32> to vector<8x1xf32>
    %51 = vector.broadcast %50 : vector<8x1xf32> to vector<8x8xf32>
    %52 = arith.subf %48, %51 : vector<8x8xf32>
    %53 = math.exp %52 : vector<8x8xf32>
    %cst_24 = arith.constant dense<0.000000e+00> : vector<8xf32>
    %54 = vector.multi_reduction <add>, %53, %cst_24 [1] : vector<8x8xf32> to vector<8xf32>
    %55 = vector.shape_cast %54 : vector<8xf32> to vector<8x1xf32>
    %56 = tpu.reciprocal %55 {approx = true} : vector<8x1xf32> -> vector<8x1xf32>
    %57 = vector.broadcast %56 : vector<8x1xf32> to vector<8x8xf32>
    %58 = arith.mulf %53, %57 : vector<8x8xf32>
    %59 = arith.truncf %58 : vector<8x8xf32> to vector<8x8xbf16>
    %cst_25 = arith.constant dense<0.000000e+00> : vector<8x8xf32>
    %60 = tpu.matmul %59, %45, %cst_25 {dimension_numbers = #tpu.dot_dimension_numbers<[1], [0], [0], [1], [0, 0, 1, 1], [], []>} : vector<8x8xbf16>, vector<8x8xbf16>, vector<8x8xf32> -> vector<8x8xf32>
    %c0_26 = arith.constant 0 : index
    %c1 = arith.constant 1 : index
    %c0_27 = arith.constant 0 : index
    %c0_28 = arith.constant 0 : index
    %61 = vector.load %arg6[%c0_26, %c1, %c0_27, %c0_28] : memref<1x4x8x8xf32, #tpu.memory_space<vmem>>, vector<1x1x8x8xf32>
    %62 = vector.shape_cast %61 : vector<1x1x8x8xf32> to vector<8x8xf32>
    %63 = vector.shape_cast %48 : vector<8x8xf32> to vector<1x1x8x8xf32>
    tpu.vector_store %arg6[%c0_26, %c1, %c0_27, %c0_28], %63 {strides = array<i32>} : memref<1x4x8x8xf32, #tpu.memory_space<vmem>>, vector<1x1x8x8xf32>,
    %c0_29 = arith.constant 0 : index
    %c0_30 = arith.constant 0 : index
    %c8 = arith.constant 8 : index
    %64 = vector.load %arg5[%c0_29, %c0_30, %c8] : memref<1x8x32xf32, #tpu.memory_space<vmem>>, vector<1x8x8xf32>
    %65 = vector.shape_cast %64 : vector<1x8x8xf32> to vector<8x8xf32>
    %66 = vector.shape_cast %60 : vector<8x8xf32> to vector<1x8x8xf32>
    tpu.vector_store %arg5[%c0_29, %c0_30, %c8], %66 {strides = array<i32>} : memref<1x8x32xf32, #tpu.memory_space<vmem>>, vector<1x8x8xf32>,
    %67 = vector.extract_strided_slice %8 {offsets = [0, 16], sizes = [8, 8], strides = [1, 1]} : vector<8x96xf32> to vector<8x8xf32>
    %cst_31 = arith.constant 0.353553385 : f32
    %68 = vector.broadcast %cst_31 : f32 to vector<8x8xf32>
    %69 = arith.mulf %67, %68 : vector<8x8xf32>
    %70 = arith.truncf %69 : vector<8x8xf32> to vector<8x8xbf16>
    %71 = vector.extract_strided_slice %8 {offsets = [0, 48], sizes = [8, 8], strides = [1, 1]} : vector<8x96xf32> to vector<8x8xf32>
    %72 = arith.truncf %71 : vector<8x8xf32> to vector<8x8xbf16>
    %73 = vector.extract_strided_slice %8 {offsets = [0, 80], sizes = [8, 8], strides = [1, 1]} : vector<8x96xf32> to vector<8x8xf32>
    %74 = arith.truncf %73 : vector<8x8xf32> to vector<8x8xbf16>
    %cst_32 = arith.constant dense<0.000000e+00> : vector<8x8xf32>
    %75 = tpu.matmul %70, %72, %cst_32 {dimension_numbers = #tpu.dot_dimension_numbers<[1], [1], [0], [0], [0, 0, 1, 0], [], []>} : vector<8x8xbf16>, vector<8x8xbf16>, vector<8x8xf32> -> vector<8x8xf32>
    %76 = vector.broadcast %5 : vector<1x8xf32> to vector<8x8xf32>
    %77 = arith.addf %75, %76 : vector<8x8xf32>
    %cst_33 = arith.constant dense<0xFF800000> : vector<8xf32>
    %78 = vector.multi_reduction <maximumf>, %77, %cst_33 [1] : vector<8x8xf32> to vector<8xf32>
    %79 = vector.shape_cast %78 : vector<8xf32> to vector<8x1xf32>
    %80 = vector.broadcast %79 : vector<8x1xf32> to vector<8x8xf32>
    %81 = arith.subf %77, %80 : vector<8x8xf32>
    %82 = math.exp %81 : vector<8x8xf32>
    %cst_34 = arith.constant dense<0.000000e+00> : vector<8xf32>
    %83 = vector.multi_reduction <add>, %82, %cst_34 [1] : vector<8x8xf32> to vector<8xf32>
    %84 = vector.shape_cast %83 : vector<8xf32> to vector<8x1xf32>
    %85 = tpu.reciprocal %84 {approx = true} : vector<8x1xf32> -> vector<8x1xf32>
    %86 = vector.broadcast %85 : vector<8x1xf32> to vector<8x8xf32>
    %87 = arith.mulf %82, %86 : vector<8x8xf32>
    %88 = arith.truncf %87 : vector<8x8xf32> to vector<8x8xbf16>
    %cst_35 = arith.constant dense<0.000000e+00> : vector<8x8xf32>
    %89 = tpu.matmul %88, %74, %cst_35 {dimension_numbers = #tpu.dot_dimension_numbers<[1], [0], [0], [1], [0, 0, 1, 1], [], []>} : vector<8x8xbf16>, vector<8x8xbf16>, vector<8x8xf32> -> vector<8x8xf32>
    %c0_36 = arith.constant 0 : index
    %c2 = arith.constant 2 : index
    %c0_37 = arith.constant 0 : index
    %c0_38 = arith.constant 0 : index
    %90 = vector.load %arg6[%c0_36, %c2, %c0_37, %c0_38] : memref<1x4x8x8xf32, #tpu.memory_space<vmem>>, vector<1x1x8x8xf32>
    %91 = vector.shape_cast %90 : vector<1x1x8x8xf32> to vector<8x8xf32>
    %92 = vector.shape_cast %77 : vector<8x8xf32> to vector<1x1x8x8xf32>
    tpu.vector_store %arg6[%c0_36, %c2, %c0_37, %c0_38], %92 {strides = array<i32>} : memref<1x4x8x8xf32, #tpu.memory_space<vmem>>, vector<1x1x8x8xf32>,
    %c0_39 = arith.constant 0 : index
    %c0_40 = arith.constant 0 : index
    %c16 = arith.constant 16 : index
    %93 = vector.load %arg5[%c0_39, %c0_40, %c16] : memref<1x8x32xf32, #tpu.memory_space<vmem>>, vector<1x8x8xf32>
    %94 = vector.shape_cast %93 : vector<1x8x8xf32> to vector<8x8xf32>
    %95 = vector.shape_cast %89 : vector<8x8xf32> to vector<1x8x8xf32>
    tpu.vector_store %arg5[%c0_39, %c0_40, %c16], %95 {strides = array<i32>} : memref<1x8x32xf32, #tpu.memory_space<vmem>>, vector<1x8x8xf32>,
    %96 = vector.extract_strided_slice %8 {offsets = [0, 24], sizes = [8, 8], strides = [1, 1]} : vector<8x96xf32> to vector<8x8xf32>
    %cst_41 = arith.constant 0.353553385 : f32
    %97 = vector.broadcast %cst_41 : f32 to vector<8x8xf32>
    %98 = arith.mulf %96, %97 : vector<8x8xf32>
    %99 = arith.truncf %98 : vector<8x8xf32> to vector<8x8xbf16>
    %100 = vector.extract_strided_slice %8 {offsets = [0, 56], sizes = [8, 8], strides = [1, 1]} : vector<8x96xf32> to vector<8x8xf32>
    %101 = arith.truncf %100 : vector<8x8xf32> to vector<8x8xbf16>
    %102 = vector.extract_strided_slice %8 {offsets = [0, 88], sizes = [8, 8], strides = [1, 1]} : vector<8x96xf32> to vector<8x8xf32>
    %103 = arith.truncf %102 : vector<8x8xf32> to vector<8x8xbf16>
    %cst_42 = arith.constant dense<0.000000e+00> : vector<8x8xf32>
    %104 = tpu.matmul %99, %101, %cst_42 {dimension_numbers = #tpu.dot_dimension_numbers<[1], [1], [0], [0], [0, 0, 1, 0], [], []>} : vector<8x8xbf16>, vector<8x8xbf16>, vector<8x8xf32> -> vector<8x8xf32>
    %105 = vector.broadcast %5 : vector<1x8xf32> to vector<8x8xf32>
    %106 = arith.addf %104, %105 : vector<8x8xf32>
    %cst_43 = arith.constant dense<0xFF800000> : vector<8xf32>
    %107 = vector.multi_reduction <maximumf>, %106, %cst_43 [1] : vector<8x8xf32> to vector<8xf32>
    %108 = vector.shape_cast %107 : vector<8xf32> to vector<8x1xf32>
    %109 = vector.broadcast %108 : vector<8x1xf32> to vector<8x8xf32>
    %110 = arith.subf %106, %109 : vector<8x8xf32>
    %111 = math.exp %110 : vector<8x8xf32>
    %cst_44 = arith.constant dense<0.000000e+00> : vector<8xf32>
    %112 = vector.multi_reduction <add>, %111, %cst_44 [1] : vector<8x8xf32> to vector<8xf32>
    %113 = vector.shape_cast %112 : vector<8xf32> to vector<8x1xf32>
    %114 = tpu.reciprocal %113 {approx = true} : vector<8x1xf32> -> vector<8x1xf32>
    %115 = vector.broadcast %114 : vector<8x1xf32> to vector<8x8xf32>
    %116 = arith.mulf %111, %115 : vector<8x8xf32>
    %117 = arith.truncf %116 : vector<8x8xf32> to vector<8x8xbf16>
    %cst_45 = arith.constant dense<0.000000e+00> : vector<8x8xf32>
    %118 = tpu.matmul %117, %103, %cst_45 {dimension_numbers = #tpu.dot_dimension_numbers<[1], [0], [0], [1], [0, 0, 1, 1], [], []>} : vector<8x8xbf16>, vector<8x8xbf16>, vector<8x8xf32> -> vector<8x8xf32>
    %c0_46 = arith.constant 0 : index
    %c3 = arith.constant 3 : index
    %c0_47 = arith.constant 0 : index
    %c0_48 = arith.constant 0 : index
    %119 = vector.load %arg6[%c0_46, %c3, %c0_47, %c0_48] : memref<1x4x8x8xf32, #tpu.memory_space<vmem>>, vector<1x1x8x8xf32>
    %120 = vector.shape_cast %119 : vector<1x1x8x8xf32> to vector<8x8xf32>
    %121 = vector.shape_cast %106 : vector<8x8xf32> to vector<1x1x8x8xf32>
    tpu.vector_store %arg6[%c0_46, %c3, %c0_47, %c0_48], %121 {strides = array<i32>} : memref<1x4x8x8xf32, #tpu.memory_space<vmem>>, vector<1x1x8x8xf32>,
    %c0_49 = arith.constant 0 : index
    %c0_50 = arith.constant 0 : index
    %c24 = arith.constant 24 : index
    %122 = vector.load %arg5[%c0_49, %c0_50, %c24] : memref<1x8x32xf32, #tpu.memory_space<vmem>>, vector<1x8x8xf32>
    %123 = vector.shape_cast %122 : vector<1x8x8xf32> to vector<8x8xf32>
    %124 = vector.shape_cast %118 : vector<8x8xf32> to vector<1x8x8xf32>
    tpu.vector_store %arg5[%c0_49, %c0_50, %c24], %124 {strides = array<i32>} : memref<1x8x32xf32, #tpu.memory_space<vmem>>, vector<1x8x8xf32>,
    return
  }
  func.func @transform_0(%arg0: i32) -> (i32, i32, i32) {
    %c0_i32 = arith.constant 0 : i32
    %c0_i32_0 = arith.constant 0 : i32
    %c0_i32_1 = arith.constant 0 : i32
    return %arg0, %c0_i32, %c0_i32_0 : i32, i32, i32
  }
  func.func @transform_1(%arg0: i32) -> (i32, i32) {
    %c0_i32 = arith.constant 0 : i32
    %c0_i32_0 = arith.constant 0 : i32
    %c0_i32_1 = arith.constant 0 : i32
    return %c0_i32, %c0_i32_0 : i32, i32
  }
  func.func @transform_2(%arg0: i32) -> (i32, i32) {
    %c0_i32 = arith.constant 0 : i32
    %c0_i32_0 = arith.constant 0 : i32
    %c0_i32_1 = arith.constant 0 : i32
    return %c0_i32, %c0_i32_0 : i32, i32
  }
  func.func @transform_3(%arg0: i32) -> (i32, i32, i32) {
    %c0_i32 = arith.constant 0 : i32
    %c0_i32_0 = arith.constant 0 : i32
    %c0_i32_1 = arith.constant 0 : i32
    return %arg0, %c0_i32, %c0_i32_0 : i32, i32, i32
  }
  func.func @transform_4(%arg0: i32) -> (i32, i32, i32) {
    %c0_i32 = arith.constant 0 : i32
    %c0_i32_0 = arith.constant 0 : i32
    %c0_i32_1 = arith.constant 0 : i32
    return %arg0, %c0_i32, %c0_i32_0 : i32, i32, i32
  }
  func.func @transform_5(%arg0: i32) -> (i32, i32, i32, i32) {
    %c0_i32 = arith.constant 0 : i32
    %c0_i32_0 = arith.constant 0 : i32
    %c0_i32_1 = arith.constant 0 : i32
    %c0_i32_2 = arith.constant 0 : i32
    return %arg0, %c0_i32, %c0_i32_0, %c0_i32_1 : i32, i32, i32, i32
  }
}

</mosaic_0001>

<llo_original>
// kernel: tpu_custom_call.1
$region0: #{tpu_custom_call.1}
  #allocation0 [shape = 'u32[]', space=smem, size = 0x4, offset = 0x4, fixed_abs, tag = 'smem constant byte address 0x4 - core index']
  #allocation1 [shape = 'u32[144,128]{1,0:T(1,128)}', space=vmem, size = 0x12000, scoped, tag = 'internal scratch']
  %s0 = inlined_call_operand.hbm [shape: bf16[2,8,32], index: 0, kind: input, shape index: {}]
  %s1 = inlined_call_operand.hbm [shape: bf16[32,96], index: 1, kind: input, shape index: {}]
  %s2 = inlined_call_operand.vmem [shape: f32[1,96], index: 2, kind: input, shape index: {}]
  %s3 = inlined_call_operand.vmem [shape: f32[2,1,8], index: 3, kind: input, shape index: {}]
  %s4 = inlined_call_operand.hbm [shape: f32[2,8,32], index: 4, kind: output, shape index: {0}]
  %s5 = inlined_call_operand.hbm [shape: f32[2,4,8,8], index: 5, kind: output, shape index: {1}]
  %6 = xla_tuple %s4, %s5
  %s7 = sld [smem:[#allocation0]]
  $region65: #{tpu_custom_call.1} parent=0
    _
  %s9 = ssub.s32 1, %s7
  %s10 = scalar_select 0, %s9, %s7
  $region1: #{tpu_custom_call.1} parent=0
    #allocation2 [shape = 'u8[4096]{0}', space=vmem, size = 0x1000, scoped, tag = 'input window, operand 0']
    #allocation3 [shape = 's32[2]{0}', space=sflag, size = 0x8, scoped, tag = 'scoped memory for tpu_custom_call.1']
    #allocation4 [shape = 's32[2]{0}', space=sflag, size = 0x8, scoped, tag = 'scoped memory for tpu_custom_call.1']
    #allocation5 [shape = 'u8[8192]{0}', space=vmem, size = 0x2000, scoped, tag = 'input window, operand 1, single buffered']
    #allocation6 [shape = 's32[1]{0}', space=sflag, size = 0x4, scoped, tag = 'scoped memory for tpu_custom_call.1']
    #allocation7 [shape = 'u8[8192]{0}', space=vmem, size = 0x2000, scoped, tag = 'output window, operand 0']
    #allocation8 [shape = 'u8[32768]{0}', space=vmem, size = 0x8000, scoped, tag = 'output window, operand 1']
    #allocation9 [shape = 's32[2]{0}', space=sflag, size = 0x8, scoped, tag = 'scoped memory for tpu_custom_call.1']
    %11 = vsyncpa [#allocation3], 0
    %s12 = scalar_lea.sflag [#allocation3], 1
    %13 = vsyncpa %s12, 0
    %14 = vsyncpa [#allocation6], 0
    %15 = vsyncpa [#allocation4], 0
    %s16 = scalar_lea.sflag [#allocation4], 1
    %17 = vsyncpa %s16, 0
    %18 = vsyncpa [#allocation9], 0
    %s19 = scalar_lea.sflag [#allocation9], 1
    %20 = vsyncpa %s19, 0
    loop: start=0, step=1, limit=4
    $region2: #{tpu_custom_call.1} parent=1 // loop_pre_header
      _
    $region3: #{tpu_custom_call.1} parent=1 // loop_header
      %s22 = sphi 0, %s26
      %p23 = scmp.ge.s32.totalorder %s22, 4
      %s32 = sphi 0, %s34
      %s35 = sphi 0, %s32
      %s36 = sphi 0, %s35
      %s52 = sphi 0, %s36
      %s56 = sphi 0, %s56
      %s58 = sphi 0, %s56
      %s59 = sphi 0, %s58
      %s73 = sphi 0, %s59
      %s77 = sphi 0, %s77
      %s79 = sphi 0, %s77
      %s80 = sphi 0, %s79
      %s94 = sphi 0, %s80
      %s100 = sphi 0, %s102
      %s103 = sphi 0, %s100
      %s104 = sphi 0, %s103
      %s120 = sphi 0, %s104
      %s126 = sphi 0, %s128
      %s129 = sphi 0, %s126
      %s130 = sphi 0, %s129
      %s146 = sphi 0, %s130
      %s152 = sphi 0, %s154
      %s155 = sphi 0, %s152
      %s156 = sphi 0, %s155
      %s172 = sphi 0, %s156
    $region4: #{tpu_custom_call.1} parent=1 // loop_header_branch
      %25 = sbr.rel (%p23) target = $region8
    $region5: #{tpu_custom_call.1} parent=1 // loop_body
      %s27 = ssub.s32 %s22, 1
      %s28 = ssub.s32 %s22, 2
      %s29 = sadd.s32 %s22, 1
      %s30 = ssub.s32 %s22, %s29
      %p31 = scmp.eq.s32.totalorder %s30, 0
      %s33 = sadd.s32 %s32, 1
      %s34 = scalar_select %p31, %s32, %s33
      %p37 = pneg %p31
      %p38 = scmp.eq.s32.totalorder %s22, 1
      %p39 = por %p37, %p38
      %p40 = scmp.ne.s32.totalorder %s32, %s35
      %p41 = scmp.eq.s32.totalorder %s22, 0
      %p42 = por %p40, %p41
      %p43 = scmp.ne.s32.totalorder %s32, %s35
      %p44 = scmp.eq.s32.totalorder %s27, 1
      %p45 = por %p43, %p44
      %p46 = scmp.ne.s32.totalorder %s35, %s36
      %p47 = scmp.eq.s32.totalorder %s27, 0
      %p48 = por %p46, %p47
      %p49 = scmp.ne.s32.totalorder %s35, %s36
      %p50 = scmp.eq.s32.totalorder %s28, 1
      %p51 = por %p49, %p50
      %p53 = scmp.ne.s32.totalorder %s36, %s52
      %p54 = scmp.eq.s32.totalorder %s28, 0
      %p55 = por %p53, %p54
      %s57 = sadd.s32 %s56, 1
      %p60 = scmp.eq.s32.totalorder %s22, 1
      %p61 = scmp.ne.s32.totalorder %s56, %s58
      %p62 = scmp.eq.s32.totalorder %s22, 0
      %p63 = por %p61, %p62
      %p64 = scmp.ne.s32.totalorder %s56, %s58
      %p65 = scmp.eq.s32.totalorder %s27, 1
      %p66 = por %p64, %p65
      %p67 = scmp.ne.s32.totalorder %s58, %s59
      %p68 = scmp.eq.s32.totalorder %s27, 0
      %p69 = por %p67, %p68
      %p70 = scmp.ne.s32.totalorder %s58, %s59
      %p71 = scmp.eq.s32.totalorder %s28, 1
      %p72 = por %p70, %p71
      %p74 = scmp.ne.s32.totalorder %s59, %s73
      %p75 = scmp.eq.s32.totalorder %s28, 0
      %p76 = por %p74, %p75
      %s78 = sadd.s32 %s77, 1
      %p81 = scmp.eq.s32.totalorder %s22, 1
      %p82 = scmp.ne.s32.totalorder %s77, %s79
      %p83 = scmp.eq.s32.totalorder %s22, 0
      %p84 = por %p82, %p83
      %p85 = scmp.ne.s32.totalorder %s77, %s79
      %p86 = scmp.eq.s32.totalorder %s27, 1
      %p87 = por %p85, %p86
      %p88 = scmp.ne.s32.totalorder %s79, %s80
      %p89 = scmp.eq.s32.totalorder %s27, 0
      %p90 = por %p88, %p89
      %p91 = scmp.ne.s32.totalorder %s79, %s80
      %p92 = scmp.eq.s32.totalorder %s28, 1
      %p93 = por %p91, %p92
      %p95 = scmp.ne.s32.totalorder %s80, %s94
      %p96 = scmp.eq.s32.totalorder %s28, 0
      %p97 = por %p95, %p96
      %s98 = ssub.s32 %s22, %s29
      %p99 = scmp.eq.s32.totalorder %s98, 0
      %s101 = sadd.s32 %s100, 1
      %s102 = scalar_select %p99, %s100, %s101
      %p105 = pneg %p99
      %p106 = scmp.eq.s32.totalorder %s22, 1
      %p107 = por %p105, %p106
      %p108 = scmp.ne.s32.totalorder %s100, %s103
      %p109 = scmp.eq.s32.totalorder %s22, 0
      %p110 = por %p108, %p109
      %p111 = scmp.ne.s32.totalorder %s100, %s103
      %p112 = scmp.eq.s32.totalorder %s27, 1
      %p113 = por %p111, %p112
      %p114 = scmp.ne.s32.totalorder %s103, %s104
      %p115 = scmp.eq.s32.totalorder %s27, 0
      %p116 = por %p114, %p115
      %p117 = scmp.ne.s32.totalorder %s103, %s104
      %p118 = scmp.eq.s32.totalorder %s28, 1
      %p119 = por %p117, %p118
      %p121 = scmp.ne.s32.totalorder %s104, %s120
      %p122 = scmp.eq.s32.totalorder %s28, 0
      %p123 = por %p121, %p122
      %s124 = ssub.s32 %s22, %s29
      %p125 = scmp.eq.s32.totalorder %s124, 0
      %s127 = sadd.s32 %s126, 1
      %s128 = scalar_select %p125, %s126, %s127
      %p131 = pneg %p125
      %p132 = scmp.eq.s32.totalorder %s22, 1
      %p133 = por %p131, %p132
      %p134 = scmp.ne.s32.totalorder %s126, %s129
      %p135 = scmp.eq.s32.totalorder %s22, 0
      %p136 = por %p134, %p135
      %p137 = scmp.ne.s32.totalorder %s126, %s129
      %p138 = scmp.eq.s32.totalorder %s27, 1
      %p139 = por %p137, %p138
      %p140 = scmp.ne.s32.totalorder %s129, %s130
      %p141 = scmp.eq.s32.totalorder %s27, 0
      %p142 = por %p140, %p141
      %p143 = scmp.ne.s32.totalorder %s129, %s130
      %p144 = scmp.eq.s32.totalorder %s28, 1
      %p145 = por %p143, %p144
      %p147 = scmp.ne.s32.totalorder %s130, %s146
      %p148 = scmp.eq.s32.totalorder %s28, 0
      %p149 = por %p147, %p148
      %s150 = ssub.s32 %s22, %s29
      %p151 = scmp.eq.s32.totalorder %s150, 0
      %s153 = sadd.s32 %s152, 1
      %s154 = scalar_select %p151, %s152, %s153
      %p157 = pneg %p151
      %p158 = scmp.eq.s32.totalorder %s22, 1
      %p159 = por %p157, %p158
      %p160 = scmp.ne.s32.totalorder %s152, %s155
      %p161 = scmp.eq.s32.totalorder %s22, 0
      %p162 = por %p160, %p161
      %p163 = scmp.ne.s32.totalorder %s152, %s155
      %p164 = scmp.eq.s32.totalorder %s27, 1
      %p165 = por %p163, %p164
      %p166 = scmp.ne.s32.totalorder %s155, %s156
      %p167 = scmp.eq.s32.totalorder %s27, 0
      %p168 = por %p166, %p167
      %p169 = scmp.ne.s32.totalorder %s155, %s156
      %p170 = scmp.eq.s32.totalorder %s28, 1
      %p171 = por %p169, %p170
      %p173 = scmp.ne.s32.totalorder %s156, %s172
      %p174 = scmp.eq.s32.totalorder %s28, 0
      %p175 = por %p173, %p174
      %p176 = scmp.le.s32.totalorder 1, %s22
      %p177 = scmp.lt.s32.totalorder %s22, 3
      %p178 = pnand %p176, %p177
      %p179 = pneg %p178
      // Predicated region
      $region9: #{tpu_custom_call.1} parent=5 // pred_check
        _
      $region10: #{tpu_custom_call.1} parent=5 // pred_check_branch
        %181 = sbr.rel (%p178) target = $region12
      $region11: #{tpu_custom_call.1} parent=5 // pred_region
        %s182 = ssub.s32 %s22, 1
        // Predicated region
        $region13: #{tpu_custom_call.1} parent=11 // pred_check
          %p183 = pneg %p69
        $region14: #{tpu_custom_call.1} parent=11 // pred_check_branch
          %185 = sbr.rel (%p183) target = $region16
        $region15: #{tpu_custom_call.1} parent=11 // pred_region
          %s187 = ssub.s32 256, 256
          %188 = vsyncadd [#allocation6], %s187
          %s189 = sshll.u32 [#allocation5], 4
          %s190 = int_to_ptr.vmem [resolvable:$true] %s189
          %195 = dma.hbm_to_vmem [thread:$0]  %s1, 256, %s190, [#allocation6], 64, 64, 4
        $region16: #{tpu_custom_call.1} parent=11 // pred_fallthru
          _
        // Predicated region
        $region17: #{tpu_custom_call.1} parent=11 // pred_check
          %p196 = pneg %p90
        $region18: #{tpu_custom_call.1} parent=11 // pred_check_branch
          %198 = sbr.rel (%p196) target = $region20
        $region19: #{tpu_custom_call.1} parent=11 // pred_region
          _
        $region20: #{tpu_custom_call.1} parent=11 // pred_fallthru
          _
      $region12: #{tpu_custom_call.1} parent=5 // pred_fallthru
        _
      %p199 = scmp.lt.s32.totalorder %s22, 2
      // Predicated region
      $region21: #{tpu_custom_call.1} parent=5 // pred_check
        %p200 = pneg %p199
      $region22: #{tpu_custom_call.1} parent=5 // pred_check_branch
        %202 = sbr.rel (%p200) target = $region24
      $region23: #{tpu_custom_call.1} parent=5 // pred_region
        // Predicated region
        $region25: #{tpu_custom_call.1} parent=23 // pred_check
          %p203 = pneg %p42
        $region26: #{tpu_custom_call.1} parent=23 // pred_check_branch
          %205 = sbr.rel (%p203) target = $region28
        $region27: #{tpu_custom_call.1} parent=23 // pred_region
          %s206 = sand.u32 %s32, 1
          %s207 = scalar_lea.sflag [#allocation3], %s206
          %s208 = sand.u32 %s32, 1
          %s209 = smul.addr %s208, 4
          %s210 = scalar_lea.vmem [#allocation2], %s209
          %s212 = ssub.s32 64, 64
          %213 = vsyncadd %s207, %s212
          %s214 = smul.addr %s22, 64
          %s215 = scalar_lea.hbm %s0, %s214
          %s217 = sshll.u32 %s210, 4
          %s218 = int_to_ptr.vmem [resolvable:$true] %s217
          %220 = dma.hbm_to_vmem [thread:$0]  %s215, 64, %s218, %s207
        $region28: #{tpu_custom_call.1} parent=23 // pred_fallthru
          _
        // Predicated region
        $region29: #{tpu_custom_call.1} parent=23 // pred_check
          %p221 = pneg %p110
        $region30: #{tpu_custom_call.1} parent=23 // pred_check_branch
          %223 = sbr.rel (%p221) target = $region32
        $region31: #{tpu_custom_call.1} parent=23 // pred_region
          %p224 = scmp.lt.s32.totalorder %s22, 1
          %s225 = scalar_select %p224, %s22, 1
          %s226 = scalar_lea.vmem %s3, %s225
        $region32: #{tpu_custom_call.1} parent=23 // pred_fallthru
          _
      $region24: #{tpu_custom_call.1} parent=5 // pred_fallthru
        _
      %p227 = scmp.le.s32.totalorder 1, %s22
      %p228 = scmp.lt.s32.totalorder %s22, 3
      %p229 = pnand %p227, %p228
      %p230 = pneg %p229
      // Predicated region
      $region33: #{tpu_custom_call.1} parent=5 // pred_check
        _
      $region34: #{tpu_custom_call.1} parent=5 // pred_check_branch
        %232 = sbr.rel (%p229) target = $region36
      $region35: #{tpu_custom_call.1} parent=5 // pred_region
        %s233 = ssub.s32 %s22, 1
        %s234 = sand.u32 %s35, 1
        %s235 = scalar_lea.sflag [#allocation3], %s234
        %s236 = sand.u32 %s35, 1
        %s237 = smul.addr %s236, 4
        %s238 = scalar_lea.vmem [#allocation2], %s237
        // Predicated region
        $region37: #{tpu_custom_call.1} parent=35 // pred_check
          %p239 = pneg %p48
        $region38: #{tpu_custom_call.1} parent=35 // pred_check_branch
          %241 = sbr.rel (%p239) target = $region40
        $region39: #{tpu_custom_call.1} parent=35 // pred_region
          %242 = dma.done %s235, 64
        $region40: #{tpu_custom_call.1} parent=35 // pred_fallthru
          _
        // Predicated region
        $region41: #{tpu_custom_call.1} parent=35 // pred_check
          %p243 = pneg %p69
        $region42: #{tpu_custom_call.1} parent=35 // pred_check_branch
          %245 = sbr.rel (%p243) target = $region44
        $region43: #{tpu_custom_call.1} parent=35 // pred_region
          %246 = dma.done [#allocation6], 256
        $region44: #{tpu_custom_call.1} parent=35 // pred_fallthru
          _
        %s247 = sand.u32 %s35, 1
        %s248 = scalar_lea.sflag [#allocation3], %s247
        %s249 = sand.u32 %s35, 1
        %s250 = smul.addr %s249, 4
        %s251 = scalar_lea.vmem [#allocation2], %s250
        %p252 = pneg %p48
        %p253 = pneg %p45
        %p254 = pneg %p69
        %p255 = pneg %p66
        %p256 = pneg %p90
        %p257 = pneg %p87
        %p258 = scmp.lt.s32.totalorder %s27, 1
        %s259 = scalar_select %p258, %s27, 1
        %s260 = scalar_lea.vmem %s3, %s259
        %p261 = pneg %p116
        %p262 = pneg %p113
        %p263 = pneg %p142
        %p264 = pneg %p139
        %s265 = sand.u32 %s129, 1
        %s266 = scalar_lea.sflag [#allocation4], %s265
        %s267 = sand.u32 %s129, 1
        %s268 = smul.addr %s267, 8
        %s269 = scalar_lea.vmem [#allocation7], %s268
        %p270 = pneg %p168
        %p271 = pneg %p165
        %s272 = sand.u32 %s155, 1
        %s273 = scalar_lea.sflag [#allocation9], %s272
        %s274 = sand.u32 %s155, 1
        %s275 = smul.addr %s274, 32
        %s276 = scalar_lea.vmem [#allocation8], %s275
        %p277 = scmp.lt.s32.totalorder %s27, 1
        %s278 = scalar_select %p277, %s27, 1
        %s279 = scalar_lea.vmem %s3, %s278
        %v281 = vld [vmem:[%s238] sm:$0xf]
        %v282 = vld [vmem:[#allocation5] sm:$0xf]
        %v283 = vld [vmem:[#allocation5 + $0x4] sm:$0xf]
        %v284 = vld [vmem:[#allocation5 + $0x8] sm:$0xf]
        %v285 = vld [vmem:[#allocation5 + $0xc] sm:$0xf]
        %v286 = vld [vmem:[%s2] sm:$0x1]
        %v287 = vld [vmem:[%s279] sm:$0x1]
        %v289 = vlaneseq
        %v290 = vshrl.u32 %v289, 7
        %v291 = vsub.s32 0, %v290
        %v292 = vrot.slane %v286, %v291
        %v298 = vunpack.c.l.b16 %v282
        %v299 = vunpack.c.l.b16 %v283
        %v300 = vunpack.c.l.b16 %v284
        %v301 = vunpack.c.l.b16 %v285
        %v302 = vpack.c.b16 %v299, %v298
        %v303 = vpack.c.b16 %v301, %v300
        %vm306 = vcmask 261120
        %v308 = vsel %vm306, %v281, 0
        %310 = vmatprep.subr.bf16.mxu0 0
        %311 = vmatpush1.bf16.msra.mxu0 %v302
        %312 = vmatprep.subr.bf16.mxu0 0
        %313 = vmatpush1.bf16.msra.mxu0 %v303
        %314 = vmatprep.subr.bf16.mxu0 0
        %315 = vmatpush1.bf16.msra.mxu0 0
        %316 = vmatprep.subr.bf16.mxu0 0
        %317 = vmatpush1.bf16.msra.mxu0 0
        %318 = vmatprep.subr.bf16.mxu0 0
        %319 = vmatpush1.bf16.msra.mxu0 0
        %320 = vmatprep.subr.bf16.mxu0 0
        %321 = vmatpush1.bf16.msra.mxu0 0
        %322 = vmatprep.subr.bf16.mxu0 0
        %323 = vmatpush1.bf16.msra.mxu0 0
        %324 = vmatprep.subr.bf16.mxu0 0
        %325 = vmatpush1.bf16.msra.mxu0 0
        %326 = vmatprep.subr.bf16.mxu0 0
        %327 = vmatpush1.bf16.msra.mxu0 0
        %328 = vmatprep.subr.bf16.mxu0 0
        %329 = vmatpush1.bf16.msra.mxu0 0
        %330 = vmatprep.subr.bf16.mxu0 0
        %331 = vmatpush1.bf16.msra.mxu0 0
        %332 = vmatprep.subr.bf16.mxu0 0
        %333 = vmatpush1.bf16.msra.mxu0 0
        %334 = vmatprep.subr.bf16.mxu0 0
        %335 = vmatpush1.bf16.msra.mxu0 0
        %336 = vmatprep.subr.bf16.mxu0 0
        %337 = vmatpush1.bf16.msra.mxu0 0
        %338 = vmatprep.subr.bf16.mxu0 0
        %339 = vmatpush1.bf16.msra.mxu0 0
        %340 = vmatprep.subr.bf16.mxu0 0
        %341 = vmatpush1.bf16.msra.mxu0 0
        %342 = vmatprep.mubr.bf16.mxu0 0
        %343 = vmatmul.mubr.bf16.gmra.mrb[0].mxu0 %v308
        %v344 = vpop.f32.mrb[0].mxu0
        %v345 = vadd.f32 %v292, %v344
        %v346 = vpop.f32.mrb[0].mxu0
        %v347 = vpop.f32.mrb[0].mxu0
        %v348 = vpop.f32.mrb[0].mxu0
        %349 = vdwg.mxu0
        %v350 = vmul.f32 %v345, 0.35355338
        %v351 = vpack.c.bf16 %v350, %v350
        %v352 = vpack.c.bf16 %v345, %v345
        %v354 = vlaneseq
        %v355 = vshrl.u32 %v354, 7
        %v356 = vsub.s32 0, %v355
        %v357 = vrot.slane %v287, %v356
        %360 = vrot.lane.b32.xlu0 %v352, 96
        %v361 = vpop.permute.xlu0 %360
        %vm362 = vcmask 64512
        %v364 = vsel %vm362, %v351, 0
        %v367 = vsel %vm362, %v361, 0
        %369 = vmatprep.subr.bf16.mxu0 0
        %370 = vmatpush1.bf16.xpose.msra.mxu0 %v367
        %371 = vmatprep.subr.bf16.mxu0 0
        %372 = vmatpush1.bf16.xpose.msra.mxu0 0
        %373 = vmatprep.subr.bf16.mxu0 0
        %374 = vmatpush1.bf16.xpose.msra.mxu0 0
        %375 = vmatprep.subr.bf16.mxu0 0
        %376 = vmatpush1.bf16.xpose.msra.mxu0 0
        %377 = vmatprep.subr.bf16.mxu0 0
        %378 = vmatpush1.bf16.xpose.msra.mxu0 0
        %379 = vmatprep.subr.bf16.mxu0 0
        %380 = vmatpush1.bf16.xpose.msra.mxu0 0
        %381 = vmatprep.subr.bf16.mxu0 0
        %382 = vmatpush1.bf16.xpose.msra.mxu0 0
        %383 = vmatprep.subr.bf16.mxu0 0
        %384 = vmatpush1.bf16.xpose.msra.mxu0 0
        %385 = vmatprep.subr.bf16.mxu0 0
        %386 = vmatpush1.bf16.xpose.msra.mxu0 0
        %387 = vmatprep.subr.bf16.mxu0 0
        %388 = vmatpush1.bf16.xpose.msra.mxu0 0
        %389 = vmatprep.subr.bf16.mxu0 0
        %390 = vmatpush1.bf16.xpose.msra.mxu0 0
        %391 = vmatprep.subr.bf16.mxu0 0
        %392 = vmatpush1.bf16.xpose.msra.mxu0 0
        %393 = vmatprep.subr.bf16.mxu0 0
        %394 = vmatpush1.bf16.xpose.msra.mxu0 0
        %395 = vmatprep.subr.bf16.mxu0 0
        %396 = vmatpush1.bf16.xpose.msra.mxu0 0
        %397 = vmatprep.subr.bf16.mxu0 0
        %398 = vmatpush1.bf16.xpose.msra.mxu0 0
        %399 = vmatprep.subr.bf16.mxu0 0
        %400 = vmatpush1.bf16.xpose.msra.mxu0 0
        %401 = vmatprep.mubr.bf16.mxu0 0
        %402 = vmatmul.mubr.bf16.gmra.mrb[0].mxu0 %v364
        %v403 = vpop.f32.mrb[0].mxu0
        %v404 = vadd.f32 %v357, %v403
        %v405 = vpop.f32.mrb[0].mxu0
        %v406 = vpop.f32.mrb[0].mxu0
        %v407 = vpop.f32.mrb[0].mxu0
        %408 = vdwg.mxu0
        %v409 = vsel %vm362, %v404, -inf
        %410 = vmax.xlane.f32.xlu0 %v409
        %v411 = vpop.xlane.xlu0 %410
        %v412 = vsub.f32 %v404, %v411
        %v413 = vmul.f32 %v412, 1.442695
        %v414 = vpow.pop %v413
        %v415 = vsel %vm362, %v414, 0.0
        %416 = vadd.xlane.f32.xlu0 %v415
        %v417 = vpop.xlane.xlu0 %416
        %v418 = vrcp.pop %v417
        %v419 = vmul.f32 %v414, %v418
        %v420 = vpack.c.bf16 %v419, %v419
        %421 = vrot.lane.b32.xlu0 %v352, 64
        %v422 = vpop.permute.xlu0 %421
        %v424 = vsel %vm362, %v420, 0
        %vm426 = vcmask 1043456
        %v428 = vsel %vm426, %v422, 0
        %430 = vmatprep.subr.bf16.mxu0 0
        %431 = vmatpush1.bf16.msra.mxu0 %v428
        %432 = vmatprep.subr.bf16.mxu0 0
        %433 = vmatpush1.bf16.msra.mxu0 0
        %434 = vmatprep.subr.bf16.mxu0 0
        %435 = vmatpush1.bf16.msra.mxu0 0
        %436 = vmatprep.subr.bf16.mxu0 0
        %437 = vmatpush1.bf16.msra.mxu0 0
        %438 = vmatprep.subr.bf16.mxu0 0
        %439 = vmatpush1.bf16.msra.mxu0 0
        %440 = vmatprep.subr.bf16.mxu0 0
        %441 = vmatpush1.bf16.msra.mxu0 0
        %442 = vmatprep.subr.bf16.mxu0 0
        %443 = vmatpush1.bf16.msra.mxu0 0
        %444 = vmatprep.subr.bf16.mxu0 0
        %445 = vmatpush1.bf16.msra.mxu0 0
        %446 = vmatprep.subr.bf16.mxu0 0
        %447 = vmatpush1.bf16.msra.mxu0 0
        %448 = vmatprep.subr.bf16.mxu0 0
        %449 = vmatpush1.bf16.msra.mxu0 0
        %450 = vmatprep.subr.bf16.mxu0 0
        %451 = vmatpush1.bf16.msra.mxu0 0
        %452 = vmatprep.subr.bf16.mxu0 0
        %453 = vmatpush1.bf16.msra.mxu0 0
        %454 = vmatprep.subr.bf16.mxu0 0
        %455 = vmatpush1.bf16.msra.mxu0 0
        %456 = vmatprep.subr.bf16.mxu0 0
        %457 = vmatpush1.bf16.msra.mxu0 0
        %458 = vmatprep.subr.bf16.mxu0 0
        %459 = vmatpush1.bf16.msra.mxu0 0
        %460 = vmatprep.subr.bf16.mxu0 0
        %461 = vmatpush1.bf16.msra.mxu0 0
        %462 = vmatprep.mubr.bf16.mxu0 0
        %463 = vmatmul.mubr.bf16.gmra.mrb[0].mxu0 %v424
        %v464 = vpop.f32.mrb[0].mxu0
        %v465 = vadd.f32 0.0, %v464
        %v466 = vpop.f32.mrb[0].mxu0
        %v467 = vpop.f32.mrb[0].mxu0
        %v468 = vpop.f32.mrb[0].mxu0
        %469 = vdwg.mxu0
        %470 = vst.msk [vmem:[%s276] sm:$0xff] %vm362, %v404
        %471 = vst.msk [vmem:[%s269] sm:$0xff] %vm362, %v465
        %473 = vrot.lane.b32.xlu0 %v351, 120
        %v474 = vpop.permute.xlu0 %473
        %475 = vrot.lane.b32.xlu0 %v352, 88
        %v476 = vpop.permute.xlu0 %475
        %v478 = vsel %vm362, %v474, 0
        %v481 = vsel %vm362, %v476, 0
        %483 = vmatprep.subr.bf16.mxu0 0
        %484 = vmatpush1.bf16.xpose.msra.mxu0 %v481
        %485 = vmatprep.subr.bf16.mxu0 0
        %486 = vmatpush1.bf16.xpose.msra.mxu0 0
        %487 = vmatprep.subr.bf16.mxu0 0
        %488 = vmatpush1.bf16.xpose.msra.mxu0 0
        %489 = vmatprep.subr.bf16.mxu0 0
        %490 = vmatpush1.bf16.xpose.msra.mxu0 0
        %491 = vmatprep.subr.bf16.mxu0 0
        %492 = vmatpush1.bf16.xpose.msra.mxu0 0
        %493 = vmatprep.subr.bf16.mxu0 0
        %494 = vmatpush1.bf16.xpose.msra.mxu0 0
        %495 = vmatprep.subr.bf16.mxu0 0
        %496 = vmatpush1.bf16.xpose.msra.mxu0 0
        %497 = vmatprep.subr.bf16.mxu0 0
        %498 = vmatpush1.bf16.xpose.msra.mxu0 0
        %499 = vmatprep.subr.bf16.mxu0 0
        %500 = vmatpush1.bf16.xpose.msra.mxu0 0
        %501 = vmatprep.subr.bf16.mxu0 0
        %502 = vmatpush1.bf16.xpose.msra.mxu0 0
        %503 = vmatprep.subr.bf16.mxu0 0
        %504 = vmatpush1.bf16.xpose.msra.mxu0 0
        %505 = vmatprep.subr.bf16.mxu0 0
        %506 = vmatpush1.bf16.xpose.msra.mxu0 0
        %507 = vmatprep.subr.bf16.mxu0 0
        %508 = vmatpush1.bf16.xpose.msra.mxu0 0
        %509 = vmatprep.subr.bf16.mxu0 0
        %510 = vmatpush1.bf16.xpose.msra.mxu0 0
        %511 = vmatprep.subr.bf16.mxu0 0
        %512 = vmatpush1.bf16.xpose.msra.mxu0 0
        %513 = vmatprep.subr.bf16.mxu0 0
        %514 = vmatpush1.bf16.xpose.msra.mxu0 0
        %515 = vmatprep.mubr.bf16.mxu0 0
        %516 = vmatmul.mubr.bf16.gmra.mrb[0].mxu0 %v478
        %v517 = vpop.f32.mrb[0].mxu0
        %v518 = vadd.f32 %v357, %v517
        %v519 = vpop.f32.mrb[0].mxu0
        %v520 = vpop.f32.mrb[0].mxu0
        %v521 = vpop.f32.mrb[0].mxu0
        %522 = vdwg.mxu0
        %v523 = vsel %vm362, %v518, -inf
        %524 = vmax.xlane.f32.xlu0 %v523
        %v525 = vpop.xlane.xlu0 %524
        %v526 = vsub.f32 %v518, %v525
        %v527 = vmul.f32 %v526, 1.442695
        %v528 = vpow.pop %v527
        %v529 = vsel %vm362, %v528, 0.0
        %530 = vadd.xlane.f32.xlu0 %v529
        %v531 = vpop.xlane.xlu0 %530
        %v532 = vrcp.pop %v531
        %v533 = vmul.f32 %v528, %v532
        %v534 = vpack.c.bf16 %v533, %v533
        %535 = vrot.lane.b32.xlu0 %v352, 56
        %v536 = vpop.permute.xlu0 %535
        %v538 = vsel %vm362, %v534, 0
        %v541 = vsel %vm426, %v536, 0
        %543 = vmatprep.subr.bf16.mxu0 0
        %544 = vmatpush1.bf16.msra.mxu0 %v541
        %545 = vmatprep.subr.bf16.mxu0 0
        %546 = vmatpush1.bf16.msra.mxu0 0
        %547 = vmatprep.subr.bf16.mxu0 0
        %548 = vmatpush1.bf16.msra.mxu0 0
        %549 = vmatprep.subr.bf16.mxu0 0
        %550 = vmatpush1.bf16.msra.mxu0 0
        %551 = vmatprep.subr.bf16.mxu0 0
        %552 = vmatpush1.bf16.msra.mxu0 0
        %553 = vmatprep.subr.bf16.mxu0 0
        %554 = vmatpush1.bf16.msra.mxu0 0
        %555 = vmatprep.subr.bf16.mxu0 0
        %556 = vmatpush1.bf16.msra.mxu0 0
        %557 = vmatprep.subr.bf16.mxu0 0
        %558 = vmatpush1.bf16.msra.mxu0 0
        %559 = vmatprep.subr.bf16.mxu0 0
        %560 = vmatpush1.bf16.msra.mxu0 0
        %561 = vmatprep.subr.bf16.mxu0 0
        %562 = vmatpush1.bf16.msra.mxu0 0
        %563 = vmatprep.subr.bf16.mxu0 0
        %564 = vmatpush1.bf16.msra.mxu0 0
        %565 = vmatprep.subr.bf16.mxu0 0
        %566 = vmatpush1.bf16.msra.mxu0 0
        %567 = vmatprep.subr.bf16.mxu0 0
        %568 = vmatpush1.bf16.msra.mxu0 0
        %569 = vmatprep.subr.bf16.mxu0 0
        %570 = vmatpush1.bf16.msra.mxu0 0
        %571 = vmatprep.subr.bf16.mxu0 0
        %572 = vmatpush1.bf16.msra.mxu0 0
        %573 = vmatprep.subr.bf16.mxu0 0
        %574 = vmatpush1.bf16.msra.mxu0 0
        %575 = vmatprep.mubr.bf16.mxu0 0
        %576 = vmatmul.mubr.bf16.gmra.mrb[0].mxu0 %v538
        %v577 = vpop.f32.mrb[0].mxu0
        %v578 = vadd.f32 0.0, %v577
        %v579 = vpop.f32.mrb[0].mxu0
        %v580 = vpop.f32.mrb[0].mxu0
        %v581 = vpop.f32.mrb[0].mxu0
        %582 = vdwg.mxu0
        %s583 = scalar_lea.vmem %s276, 8 [#allocation8]
        %584 = vst.msk [vmem:[%s583] sm:$0xff] %vm362, %v518
        %586 = vrot.lane.b32.xlu0 %v578, 8
        %v587 = vpop.permute.xlu0 %586
        %vm589 = vcmask 130112
        %590 = vst.msk [vmem:[%s269] sm:$0xff] %vm589, %v587
        %591 = vrot.lane.b32.xlu0 %v351, 112
        %v592 = vpop.permute.xlu0 %591
        %593 = vrot.lane.b32.xlu0 %v352, 80
        %v594 = vpop.permute.xlu0 %593
        %v596 = vsel %vm362, %v592, 0
        %v599 = vsel %vm362, %v594, 0
        %601 = vmatprep.subr.bf16.mxu0 0
        %602 = vmatpush1.bf16.xpose.msra.mxu0 %v599
        %603 = vmatprep.subr.bf16.mxu0 0
        %604 = vmatpush1.bf16.xpose.msra.mxu0 0
        %605 = vmatprep.subr.bf16.mxu0 0
        %606 = vmatpush1.bf16.xpose.msra.mxu0 0
        %607 = vmatprep.subr.bf16.mxu0 0
        %608 = vmatpush1.bf16.xpose.msra.mxu0 0
        %609 = vmatprep.subr.bf16.mxu0 0
        %610 = vmatpush1.bf16.xpose.msra.mxu0 0
        %611 = vmatprep.subr.bf16.mxu0 0
        %612 = vmatpush1.bf16.xpose.msra.mxu0 0
        %613 = vmatprep.subr.bf16.mxu0 0
        %614 = vmatpush1.bf16.xpose.msra.mxu0 0
        %615 = vmatprep.subr.bf16.mxu0 0
        %616 = vmatpush1.bf16.xpose.msra.mxu0 0
        %617 = vmatprep.subr.bf16.mxu0 0
        %618 = vmatpush1.bf16.xpose.msra.mxu0 0
        %619 = vmatprep.subr.bf16.mxu0 0
        %620 = vmatpush1.bf16.xpose.msra.mxu0 0
        %621 = vmatprep.subr.bf16.mxu0 0
        %622 = vmatpush1.bf16.xpose.msra.mxu0 0
        %623 = vmatprep.subr.bf16.mxu0 0
        %624 = vmatpush1.bf16.xpose.msra.mxu0 0
        %625 = vmatprep.subr.bf16.mxu0 0
        %626 = vmatpush1.bf16.xpose.msra.mxu0 0
        %627 = vmatprep.subr.bf16.mxu0 0
        %628 = vmatpush1.bf16.xpose.msra.mxu0 0
        %629 = vmatprep.subr.bf16.mxu0 0
        %630 = vmatpush1.bf16.xpose.msra.mxu0 0
        %631 = vmatprep.subr.bf16.mxu0 0
        %632 = vmatpush1.bf16.xpose.msra.mxu0 0
        %633 = vmatprep.mubr.bf16.mxu0 0
        %634 = vmatmul.mubr.bf16.gmra.mrb[0].mxu0 %v596
        %v635 = vpop.f32.mrb[0].mxu0
        %v636 = vadd.f32 %v357, %v635
        %v637 = vpop.f32.mrb[0].mxu0
        %v638 = vpop.f32.mrb[0].mxu0
        %v639 = vpop.f32.mrb[0].mxu0
        %640 = vdwg.mxu0
        %v641 = vsel %vm362, %v636, -inf
        %642 = vmax.xlane.f32.xlu0 %v641
        %v643 = vpop.xlane.xlu0 %642
        %v644 = vsub.f32 %v636, %v643
        %v645 = vmul.f32 %v644, 1.442695
        %v646 = vpow.pop %v645
        %v647 = vsel %vm362, %v646, 0.0
        %648 = vadd.xlane.f32.xlu0 %v647
        %v649 = vpop.xlane.xlu0 %648
        %v650 = vrcp.pop %v649
        %v651 = vmul.f32 %v646, %v650
        %v652 = vpack.c.bf16 %v651, %v651
        %653 = vrot.lane.b32.xlu0 %v352, 48
        %v654 = vpop.permute.xlu0 %653
        %v656 = vsel %vm362, %v652, 0
        %v659 = vsel %vm426, %v654, 0
        %661 = vmatprep.subr.bf16.mxu0 0
        %662 = vmatpush1.bf16.msra.mxu0 %v659
        %663 = vmatprep.subr.bf16.mxu0 0
        %664 = vmatpush1.bf16.msra.mxu0 0
        %665 = vmatprep.subr.bf16.mxu0 0
        %666 = vmatpush1.bf16.msra.mxu0 0
        %667 = vmatprep.subr.bf16.mxu0 0
        %668 = vmatpush1.bf16.msra.mxu0 0
        %669 = vmatprep.subr.bf16.mxu0 0
        %670 = vmatpush1.bf16.msra.mxu0 0
        %671 = vmatprep.subr.bf16.mxu0 0
        %672 = vmatpush1.bf16.msra.mxu0 0
        %673 = vmatprep.subr.bf16.mxu0 0
        %674 = vmatpush1.bf16.msra.mxu0 0
        %675 = vmatprep.subr.bf16.mxu0 0
        %676 = vmatpush1.bf16.msra.mxu0 0
        %677 = vmatprep.subr.bf16.mxu0 0
        %678 = vmatpush1.bf16.msra.mxu0 0
        %679 = vmatprep.subr.bf16.mxu0 0
        %680 = vmatpush1.bf16.msra.mxu0 0
        %681 = vmatprep.subr.bf16.mxu0 0
        %682 = vmatpush1.bf16.msra.mxu0 0
        %683 = vmatprep.subr.bf16.mxu0 0
        %684 = vmatpush1.bf16.msra.mxu0 0
        %685 = vmatprep.subr.bf16.mxu0 0
        %686 = vmatpush1.bf16.msra.mxu0 0
        %687 = vmatprep.subr.bf16.mxu0 0
        %688 = vmatpush1.bf16.msra.mxu0 0
        %689 = vmatprep.subr.bf16.mxu0 0
        %690 = vmatpush1.bf16.msra.mxu0 0
        %691 = vmatprep.subr.bf16.mxu0 0
        %692 = vmatpush1.bf16.msra.mxu0 0
        %693 = vmatprep.mubr.bf16.mxu0 0
        %694 = vmatmul.mubr.bf16.gmra.mrb[0].mxu0 %v656
        %v695 = vpop.f32.mrb[0].mxu0
        %v696 = vadd.f32 0.0, %v695
        %v697 = vpop.f32.mrb[0].mxu0
        %v698 = vpop.f32.mrb[0].mxu0
        %v699 = vpop.f32.mrb[0].mxu0
        %700 = vdwg.mxu0
        %s701 = scalar_lea.vmem %s276, 16 [#allocation8]
        %702 = vst.msk [vmem:[%s701] sm:$0xff] %vm362, %v636
        %704 = vrot.lane.b32.xlu0 %v696, 16
        %v705 = vpop.permute.xlu0 %704
        %vm707 = vcmask 195712
        %708 = vst.msk [vmem:[%s269] sm:$0xff] %vm707, %v705
        %709 = vrot.lane.b32.xlu0 %v351, 104
        %v710 = vpop.permute.xlu0 %709
        %711 = vrot.lane.b32.xlu0 %v352, 72
        %v712 = vpop.permute.xlu0 %711
        %v714 = vsel %vm362, %v710, 0
        %v717 = vsel %vm362, %v712, 0
        %719 = vmatprep.subr.bf16.mxu0 0
        %720 = vmatpush1.bf16.xpose.msra.mxu0 %v717
        %721 = vmatprep.subr.bf16.mxu0 0
        %722 = vmatpush1.bf16.xpose.msra.mxu0 0
        %723 = vmatprep.subr.bf16.mxu0 0
        %724 = vmatpush1.bf16.xpose.msra.mxu0 0
        %725 = vmatprep.subr.bf16.mxu0 0
        %726 = vmatpush1.bf16.xpose.msra.mxu0 0
        %727 = vmatprep.subr.bf16.mxu0 0
        %728 = vmatpush1.bf16.xpose.msra.mxu0 0
        %729 = vmatprep.subr.bf16.mxu0 0
        %730 = vmatpush1.bf16.xpose.msra.mxu0 0
        %731 = vmatprep.subr.bf16.mxu0 0
        %732 = vmatpush1.bf16.xpose.msra.mxu0 0
        %733 = vmatprep.subr.bf16.mxu0 0
        %734 = vmatpush1.bf16.xpose.msra.mxu0 0
        %735 = vmatprep.subr.bf16.mxu0 0
        %736 = vmatpush1.bf16.xpose.msra.mxu0 0
        %737 = vmatprep.subr.bf16.mxu0 0
        %738 = vmatpush1.bf16.xpose.msra.mxu0 0
        %739 = vmatprep.subr.bf16.mxu0 0
        %740 = vmatpush1.bf16.xpose.msra.mxu0 0
        %741 = vmatprep.subr.bf16.mxu0 0
        %742 = vmatpush1.bf16.xpose.msra.mxu0 0
        %743 = vmatprep.subr.bf16.mxu0 0
        %744 = vmatpush1.bf16.xpose.msra.mxu0 0
        %745 = vmatprep.subr.bf16.mxu0 0
        %746 = vmatpush1.bf16.xpose.msra.mxu0 0
        %747 = vmatprep.subr.bf16.mxu0 0
        %748 = vmatpush1.bf16.xpose.msra.mxu0 0
        %749 = vmatprep.subr.bf16.mxu0 0
        %750 = vmatpush1.bf16.xpose.msra.mxu0 0
        %751 = vmatprep.mubr.bf16.mxu0 0
        %752 = vmatmul.mubr.bf16.gmra.mrb[0].mxu0 %v714
        %v753 = vpop.f32.mrb[0].mxu0
        %v754 = vadd.f32 %v357, %v753
        %v755 = vpop.f32.mrb[0].mxu0
        %v756 = vpop.f32.mrb[0].mxu0
        %v757 = vpop.f32.mrb[0].mxu0
        %758 = vdwg.mxu0
        %v759 = vsel %vm362, %v754, -inf
        %760 = vmax.xlane.f32.xlu0 %v759
        %v761 = vpop.xlane.xlu0 %760
        %v762 = vsub.f32 %v754, %v761
        %v763 = vmul.f32 %v762, 1.442695
        %v764 = vpow.pop %v763
        %v765 = vsel %vm362, %v764, 0.0
        %766 = vadd.xlane.f32.xlu0 %v765
        %v767 = vpop.xlane.xlu0 %766
        %v768 = vrcp.pop %v767
        %v769 = vmul.f32 %v764, %v768
        %v770 = vpack.c.bf16 %v769, %v769
        %771 = vrot.lane.b32.xlu0 %v352, 40
        %v772 = vpop.permute.xlu0 %771
        %v774 = vsel %vm362, %v770, 0
        %v777 = vsel %vm426, %v772, 0
        %779 = vmatprep.subr.bf16.mxu0 0
        %780 = vmatpush1.bf16.msra.mxu0 %v777
        %781 = vmatprep.subr.bf16.mxu0 0
        %782 = vmatpush1.bf16.msra.mxu0 0
        %783 = vmatprep.subr.bf16.mxu0 0
        %784 = vmatpush1.bf16.msra.mxu0 0
        %785 = vmatprep.subr.bf16.mxu0 0
        %786 = vmatpush1.bf16.msra.mxu0 0
        %787 = vmatprep.subr.bf16.mxu0 0
        %788 = vmatpush1.bf16.msra.mxu0 0
        %789 = vmatprep.subr.bf16.mxu0 0
        %790 = vmatpush1.bf16.msra.mxu0 0
        %791 = vmatprep.subr.bf16.mxu0 0
        %792 = vmatpush1.bf16.msra.mxu0 0
        %793 = vmatprep.subr.bf16.mxu0 0
        %794 = vmatpush1.bf16.msra.mxu0 0
        %795 = vmatprep.subr.bf16.mxu0 0
        %796 = vmatpush1.bf16.msra.mxu0 0
        %797 = vmatprep.subr.bf16.mxu0 0
        %798 = vmatpush1.bf16.msra.mxu0 0
        %799 = vmatprep.subr.bf16.mxu0 0
        %800 = vmatpush1.bf16.msra.mxu0 0
        %801 = vmatprep.subr.bf16.mxu0 0
        %802 = vmatpush1.bf16.msra.mxu0 0
        %803 = vmatprep.subr.bf16.mxu0 0
        %804 = vmatpush1.bf16.msra.mxu0 0
        %805 = vmatprep.subr.bf16.mxu0 0
        %806 = vmatpush1.bf16.msra.mxu0 0
        %807 = vmatprep.subr.bf16.mxu0 0
        %808 = vmatpush1.bf16.msra.mxu0 0
        %809 = vmatprep.subr.bf16.mxu0 0
        %810 = vmatpush1.bf16.msra.mxu0 0
        %811 = vmatprep.mubr.bf16.mxu0 0
        %812 = vmatmul.mubr.bf16.gmra.mrb[0].mxu0 %v774
        %v813 = vpop.f32.mrb[0].mxu0
        %v814 = vadd.f32 0.0, %v813
        %v815 = vpop.f32.mrb[0].mxu0
        %v816 = vpop.f32.mrb[0].mxu0
        %v817 = vpop.f32.mrb[0].mxu0
        %818 = vdwg.mxu0
        %s819 = scalar_lea.vmem %s276, 24 [#allocation8]
        %820 = vst.msk [vmem:[%s819] sm:$0xff] %vm362, %v754
        %822 = vrot.lane.b32.xlu0 %v814, 24
        %v823 = vpop.permute.xlu0 %822
        %vm825 = vcmask 261312
        %826 = vst.msk [vmem:[%s269] sm:$0xff] %vm825, %v823
        %s827 = sand.u32 %s129, 1
        %s828 = scalar_lea.sflag [#allocation4], %s827
        %s829 = sand.u32 %s129, 1
        %s830 = smul.addr %s829, 8
        %s831 = scalar_lea.vmem [#allocation7], %s830
        %s832 = sand.u32 %s155, 1
        %s833 = scalar_lea.sflag [#allocation9], %s832
        %s834 = sand.u32 %s155, 1
        %s835 = smul.addr %s834, 32
        %s836 = scalar_lea.vmem [#allocation8], %s835
        // Predicated region
        $region45: #{tpu_custom_call.1} parent=35 // pred_check
          %p837 = pneg %p139
        $region46: #{tpu_custom_call.1} parent=35 // pred_check_branch
          %839 = sbr.rel (%p837) target = $region48
        $region47: #{tpu_custom_call.1} parent=35 // pred_region
          %s841 = ssub.s32 128, 128
          %842 = vsyncadd %s828, %s841
          %s843 = smul.addr %s27, 128
          %s844 = scalar_lea.hbm %s4, %s843
          %s846 = sshll.u32 %s831, 4
          %s847 = int_to_ptr.vmem [resolvable:$true] %s846
          %849 = dma.vmem_to_hbm [thread:$0]  %s847, 128, %s844, %s828
        $region48: #{tpu_custom_call.1} parent=35 // pred_fallthru
          _
        // Predicated region
        $region49: #{tpu_custom_call.1} parent=35 // pred_check
          %p850 = pneg %p165
        $region50: #{tpu_custom_call.1} parent=35 // pred_check_branch
          %852 = sbr.rel (%p850) target = $region52
        $region51: #{tpu_custom_call.1} parent=35 // pred_region
          %s854 = ssub.s32 512, 512
          %855 = vsyncadd %s833, %s854
          %s856 = smul.addr %s27, 4
          %s857 = smul.addr %s856, 128
          %s858 = scalar_lea.hbm %s5, %s857
          %s859 = sshll.u32 %s836, 4
          %s860 = int_to_ptr.vmem [resolvable:$true] %s859
          %865 = dma.vmem_to_hbm [thread:$0]  %s860, 512, %s858, %s833, 128, 128, 8
        $region52: #{tpu_custom_call.1} parent=35 // pred_fallthru
          _
      $region36: #{tpu_custom_call.1} parent=5 // pred_fallthru
        _
      %p866 = scmp.le.s32.totalorder 2, %s22
      // Predicated region
      $region53: #{tpu_custom_call.1} parent=5 // pred_check
        %p867 = pneg %p866
      $region54: #{tpu_custom_call.1} parent=5 // pred_check_branch
        %869 = sbr.rel (%p867) target = $region56
      $region55: #{tpu_custom_call.1} parent=5 // pred_region
        %s870 = ssub.s32 %s22, 2
        // Predicated region
        $region57: #{tpu_custom_call.1} parent=55 // pred_check
          %p871 = pneg %p145
        $region58: #{tpu_custom_call.1} parent=55 // pred_check_branch
          %873 = sbr.rel (%p871) target = $region60
        $region59: #{tpu_custom_call.1} parent=55 // pred_region
          %s874 = sand.u32 %s130, 1
          %s875 = scalar_lea.sflag [#allocation4], %s874
          %s876 = sand.u32 %s130, 1
          %s877 = smul.addr %s876, 8
          %s878 = scalar_lea.vmem [#allocation7], %s877
          %879 = dma.done %s875, 128
        $region60: #{tpu_custom_call.1} parent=55 // pred_fallthru
          _
        // Predicated region
        $region61: #{tpu_custom_call.1} parent=55 // pred_check
          %p880 = pneg %p171
        $region62: #{tpu_custom_call.1} parent=55 // pred_check_branch
          %882 = sbr.rel (%p880) target = $region64
        $region63: #{tpu_custom_call.1} parent=55 // pred_region
          %s883 = sand.u32 %s156, 1
          %s884 = scalar_lea.sflag [#allocation9], %s883
          %s885 = sand.u32 %s156, 1
          %s886 = smul.addr %s885, 32
          %s887 = scalar_lea.vmem [#allocation8], %s886
          %888 = dma.done %s884, 512
        $region64: #{tpu_custom_call.1} parent=55 // pred_fallthru
          _
      $region56: #{tpu_custom_call.1} parent=5 // pred_fallthru
        _
    $region6: #{tpu_custom_call.1} parent=1 // loop_footer
      %s26 = sadd.s32 1, %s22
    $region7: #{tpu_custom_call.1} parent=1 // loop_footer_branch
      %21 = sbr.rel target = $region3
    $region8: #{tpu_custom_call.1} parent=1 // loop_exit
      _
    %889 = vsyncpa [#allocation3], 1
    %s890 = scalar_lea.sflag [#allocation3], 1
    %891 = vsyncpa %s890, 1
    %892 = vsyncpa [#allocation6], 1
    %893 = vsyncpa [#allocation4], 1
    %s894 = scalar_lea.sflag [#allocation4], 1
    %895 = vsyncpa %s894, 1
    %896 = vsyncpa [#allocation9], 1
    %s897 = scalar_lea.sflag [#allocation9], 1
    %898 = vsyncpa %s897, 1

</llo_original>
